<compile_context>
chip_gen: v7x
topology: tpu7x:2x2x1
jax: 0.10.0
libtpu: 0.0.40
codegen_flags: <defaults>
</compile_context>

<pallas_src>
import math

import jax
import jax.numpy as jnp
from jax.experimental import pallas as pl
from jax.experimental.pallas import tpu as pltpu

_LANE = 128
_SUBLANE = 8
# ~2 MiB per tile buffer; 4 live copies (double-buffered in + out) -> ~8 MiB.
_TILE_BYTE_TARGET = 2 * 1024 * 1024


def _copy_kernel(x_ref, o_ref):
    # Identity: stream the current VMEM tile straight back out.
    o_ref[...] = x_ref[...]


def _plan_lane_dense_tiling(total_elems: int, itemsize: int):
    """Pick (rows, cols, block_rows) for a lane-dense 2D copy, or None."""
    if total_elems <= 0:
        return None

    # Widest "nice" lane extent that divides the element count -> fully dense,
    # unmasked vector stores along the lane axis.
    cols = None
    for cand in (2048, 1024, 512, 256, _LANE):
        if total_elems % cand == 0:
            cols = cand
            break
    if cols is None:
        return None

    rows = total_elems // cols
    if rows <= _SUBLANE:
        # Whole array is one small full-extent block (always legal).
        return rows, cols, rows

    # Rows per tile: multiple of 8, capped by the byte budget, and capped at
    # ~half the rows so the grid has >= 2 steps (megacore / both TCs busy).
    budget_rows = max(_SUBLANE, _TILE_BYTE_TARGET // (cols * itemsize))
    half_rows = -(-rows // 2)
    block_rows = min(budget_rows, half_rows)
    block_rows = max(_SUBLANE, (block_rows // _SUBLANE) * _SUBLANE)
    return rows, cols, block_rows


def identity_projector(img_patches: jnp.ndarray) -> jnp.ndarray:
    """IdentityProjector.forward: returns img_patches unchanged (via Pallas).

    NOTE: the zero-cost implementation is simply `return img_patches`; this
    wrapper materializes the identity through a Pallas kernel using large,
    lane-dense tiles so the unavoidable HBM read+write runs at roofline.
    """
    orig_shape = img_patches.shape
    dtype = img_patches.dtype
    total = int(math.prod(orig_shape)) if orig_shape else 1
    itemsize = jnp.dtype(dtype).itemsize

    if total == 0:
        # Nothing to copy; identity of an empty array is itself.
        return img_patches

    compiler_params = pltpu.CompilerParams(
        dimension_semantics=("parallel",),
        vmem_limit_bytes=32 << 20,
    )

    plan = _plan_lane_dense_tiling(total, itemsize)
    if plan is not None:
        rows, cols, block_rows = plan
        flat = img_patches.reshape(rows, cols)  # free layout-preserving reshape
        out = pl.pallas_call(
            _copy_kernel,
            out_shape=jax.ShapeDtypeStruct((rows, cols), dtype),
            grid=(pl.cdiv(rows, block_rows),),
            in_specs=[pl.BlockSpec((block_rows, cols), lambda i: (i, 0))],
            out_specs=pl.BlockSpec((block_rows, cols), lambda i: (i, 0)),
            compiler_params=compiler_params,
        )(flat)
        return out.reshape(orig_shape)

    # Fallback for tiny/awkward shapes whose element count is not a multiple
    # of 128: copy as a single full-extent (1, total) block.
    flat = img_patches.reshape(1, total)
    out = pl.pallas_call(
        _copy_kernel,
        out_shape=jax.ShapeDtypeStruct((1, total), dtype),
        grid=(1,),
        in_specs=[pl.BlockSpec((1, total), lambda i: (0, 0))],
        out_specs=pl.BlockSpec((1, total), lambda i: (0, 0)),
        compiler_params=compiler_params,
    )(flat)
    return out.reshape(orig_shape)


if __name__ == "__main__":
    # IdentityProjector(vision_dim, llm_dim) holds no parameters (nn.Identity),
    # so there is nothing to initialize — vision_dim only fixes the last axis.
    vision_dim = 32
    batch, num_patches = 2, 16

    key = jax.random.PRNGKey(0)
    img_patches = jax.random.normal(
        key, (batch, num_patches, vision_dim), dtype=jnp.float32
    )

    out = identity_projector(img_patches)
    out = jax.block_until_ready(out)

    assert out.shape == img_patches.shape
    assert out.dtype == img_patches.dtype
    assert bool(jnp.array_equal(out, img_patches))

    # Exercise the ragged-tail path (rows not a multiple of the tile rows).
    ragged = jax.random.normal(jax.random.PRNGKey(2), (5, 9, 256), dtype=jnp.float32)
    ragged_out = jax.block_until_ready(identity_projector(ragged))
    assert bool(jnp.array_equal(ragged_out, ragged))

    # Exercise the full-extent fallback path (element count not a multiple of 128).
    odd = jax.random.normal(jax.random.PRNGKey(1), (3, 7, 5), dtype=jnp.float32)
    odd_out = jax.block_until_ready(identity_projector(odd))
    assert bool(jnp.array_equal(odd_out, odd))

    print("KERNEL_OK")
</pallas_src>

<mosaic_0001>
module attributes {stable_mosaic.version = 11 : i64} {
  func.func @_copy_kernel(%arg0: i32, %arg1: memref<1x1024xf32, #tpu.memory_space<vmem>>, %arg2: memref<1x1024xf32, #tpu.memory_space<vmem>>) attributes {dimension_semantics = [#tpu.dimension_semantics<parallel>], iteration_bounds = array<i64: 1>, scalar_prefetch = 0 : i64, scratch_operands = 0 : i64, tpu.core_type = #tpu.core_type<tc>, window_params = [{transform_indices = @transform_0, window_bounds = array<i64: 1, 1024>}, {transform_indices = @transform_1, window_bounds = array<i64: 1, 1024>}]} {
    %c0 = arith.constant 0 : index
    %c0_0 = arith.constant 0 : index
    %0 = vector.load %arg1[%c0, %c0_0] : memref<1x1024xf32, #tpu.memory_space<vmem>>, vector<1x1024xf32>
    %c0_1 = arith.constant 0 : index
    %c0_2 = arith.constant 0 : index
    %1 = vector.load %arg2[%c0_1, %c0_2] : memref<1x1024xf32, #tpu.memory_space<vmem>>, vector<1x1024xf32>
    tpu.vector_store %arg2[%c0_1, %c0_2], %0 {strides = array<i32>} : memref<1x1024xf32, #tpu.memory_space<vmem>>, vector<1x1024xf32>,
    return
  }
  func.func @transform_0(%arg0: i32) -> (i32, i32) {
    %c0_i32 = arith.constant 0 : i32
    %c0_i32_0 = arith.constant 0 : i32
    return %arg0, %c0_i32 : i32, i32
  }
  func.func @transform_1(%arg0: i32) -> (i32, i32) {
    %c0_i32 = arith.constant 0 : i32
    %c0_i32_0 = arith.constant 0 : i32
    return %arg0, %c0_i32 : i32, i32
  }
}

</mosaic_0001>

<llo_original>
// kernel: tpu_custom_call.1
$region0: #{tpu_custom_call.1}
  #allocation0 [shape = 'u32[]', space=smem, size = 0x4, offset = 0x4, fixed_abs, tag = 'smem constant byte address 0x4 - core index']
  #allocation1 [shape = 'u32[144,128]{1,0:T(1,128)}', space=vmem, size = 0x12000, scoped, tag = 'internal scratch']
  %s0 = inlined_call_operand.hbm [shape: f32[1,1024], index: 0, kind: input, shape index: {}]
  %s1 = inlined_call_operand.hbm [shape: f32[1,1024], index: 1, kind: output, shape index: {}]
  %s2 = sld [smem:[#allocation0]]
  $region18: #{tpu_custom_call.1} parent=0
    _
  %s4 = ssub.s32 1, %s2
  %s5 = scalar_select 0, %s4, %s2
  $region1: #{tpu_custom_call.1} parent=0
    #allocation2 [shape = 'u8[4096]{0}', space=vmem, size = 0x1000, scoped, tag = 'input window, operand 0, single buffered']
    #allocation3 [shape = 's32[1]{0}', space=sflag, size = 0x4, scoped, tag = 'scoped memory for tpu_custom_call.1']
    #allocation4 [shape = 's32[1]{0}', space=sflag, size = 0x4, scoped, tag = 'scoped memory for tpu_custom_call.1']
    #allocation5 [shape = 'u8[4096]{0}', space=vmem, size = 0x1000, scoped, tag = 'output window, operand 0, single buffered']
    %6 = vsyncpa [#allocation3], 0
    %7 = vsyncpa [#allocation4], 0
    // Predicated region
    $region2: #{tpu_custom_call.1} parent=1 // pred_check
      _
    $region3: #{tpu_custom_call.1} parent=1 // pred_check_branch
      %9 = sbr.rel (0) target = $region5
    $region4: #{tpu_custom_call.1} parent=1 // pred_region
      %s11 = ssub.s32 128, 128
      %12 = vsyncadd [#allocation3], %s11
      %s14 = sshll.u32 [#allocation2], 4
      %s15 = int_to_ptr.vmem [resolvable:$true] %s14
      %17 = dma.hbm_to_vmem [thread:$0]  %s0, 128, %s15, [#allocation3]
    $region5: #{tpu_custom_call.1} parent=1 // pred_fallthru
      _
    // Predicated region
    $region6: #{tpu_custom_call.1} parent=1 // pred_check
      _
    $region7: #{tpu_custom_call.1} parent=1 // pred_check_branch
      %19 = sbr.rel (0) target = $region9
    $region8: #{tpu_custom_call.1} parent=1 // pred_region
      %20 = dma.done [#allocation3], 128
    $region9: #{tpu_custom_call.1} parent=1 // pred_fallthru
      _
    %v21 = vld [vmem:[#allocation2] sm:$0xff]
    %22 = vst [vmem:[#allocation5] sm:$0xff] %v21
    // Predicated region
    $region10: #{tpu_custom_call.1} parent=1 // pred_check
      _
    $region11: #{tpu_custom_call.1} parent=1 // pred_check_branch
      %24 = sbr.rel (0) target = $region13
    $region12: #{tpu_custom_call.1} parent=1 // pred_region
      %s26 = ssub.s32 128, 128
      %27 = vsyncadd [#allocation4], %s26
      %s29 = sshll.u32 [#allocation5], 4
      %s30 = int_to_ptr.vmem [resolvable:$true] %s29
      %32 = dma.vmem_to_hbm [thread:$0]  %s30, 128, %s1, [#allocation4]
    $region13: #{tpu_custom_call.1} parent=1 // pred_fallthru
      _
    // Predicated region
    $region14: #{tpu_custom_call.1} parent=1 // pred_check
      _
    $region15: #{tpu_custom_call.1} parent=1 // pred_check_branch
      %34 = sbr.rel (0) target = $region17
    $region16: #{tpu_custom_call.1} parent=1 // pred_region
      %35 = dma.done [#allocation4], 128
    $region17: #{tpu_custom_call.1} parent=1 // pred_fallthru
      _
    %36 = vsyncpa [#allocation3], 1
    %37 = vsyncpa [#allocation4], 1

</llo_original>
